<compile_context>
chip_gen: v7x
topology: tpu7x:2x2x1
jax: 0.10.0
libtpu: 0.0.40
codegen_flags: <defaults>
</compile_context>

<pallas_src>
import functools

import jax
import jax.numpy as jnp
import numpy as np
from jax.experimental import pallas as pl
from jax.experimental.pallas import tpu as pltpu

_BIG = 1e30  # finite sentinel (not inf: masked-masked pairs must stay finite)


def _ranking_loss_kernel(r_ref, l_ref, out_ref, acc_ref, *, neg_penalty,
                         k_classes):
    """One (K_pad, TB) batch tile: masked pairwise hinge, per-core accumulate."""
    t = pl.program_id(1)

    @pl.when(t == 0)
    def _():
        acc_ref[...] = jnp.zeros_like(acc_ref)

    r = r_ref[...]        # (K_pad, TB) ranks, batch on the lane axis
    lab = l_ref[...]      # (K_pad, TB) labels (0./1. real, -1. padding)

    # Fold pair-validity masks into the operands (K*TB work instead of K^2*TB).
    rw = jnp.where(lab == 0.0, r + jnp.float32(neg_penalty),
                   jnp.float32(-_BIG))          # "wrong/absent" candidates
    rc = jnp.where(lab == 1.0, r, jnp.float32(_BIG))   # "correct" candidates

    # Loop over the correct-class index: per-iteration working set is a single
    # (K_pad, TB) slab, never a (K, K, TB) cube.  K is small & static, so the
    # Python loop fully unrolls with static (free) sublane slices.
    acc = jnp.zeros_like(rw)
    for c in range(k_classes):
        acc = acc + jnp.maximum(rw - rc[c:c + 1, :], 0.0)
    acc_ref[...] += acc

    @pl.when(t == pl.num_programs(1) - 1)
    def _():
        # Single cross-sublane reduce per core; lanes stay dense for the store.
        out_ref[...] = jnp.sum(acc_ref[...], axis=0, keepdims=True)[None]


def ranking_loss(ranks, labels, class_ids_loaded, neg_penalty=0.03, *,
                 tile_b=2048, num_cores=1):
    """JAX/Pallas equivalent of RankingLoss.forward (device arg dropped)."""
    # Glue: gather the loaded classes (plain JAX axis-1 gather).
    r = jnp.take(ranks.astype(jnp.float32), class_ids_loaded, axis=1)    # (B, K)
    l = jnp.take(labels.astype(jnp.float32), class_ids_loaded, axis=1)   # (B, K)
    B, K = r.shape

    # Explicit sublane padding of the class axis (multiple of 8).
    K_pad = 8 * pl.cdiv(K, 8)

    # Lane tile: as big as possible while one (K_pad, TB) f32 slab stays
    # ~12 vregs (48 KiB), so rw/rc/acc/temp fit the 64-vreg file (no spills).
    slab_elems = (48 * 1024) // 4
    tb_cap = max(128, ((slab_elems // K_pad) // 128) * 128)
    TB = max(128, min(int(tile_b), tb_cap, 128 * pl.cdiv(B, 128)))

    nt_total = pl.cdiv(B, TB)
    nc = max(1, min(int(num_cores), nt_total))
    nt_core = pl.cdiv(nt_total, nc)
    B_pad = nc * nt_core * TB

    # Lane-dense layout: batch on the 128-lane axis, classes on sublanes.
    rT = r.T                                                             # (K, B)
    lT = l.T
    pad_k = K_pad - K
    pad_b = B_pad - B
    if pad_k or pad_b:
        rT = jnp.pad(rT, ((0, pad_k), (0, pad_b)))
        # Pad label = -1: neither "correct" (==1) nor "wrong" (==0) -> zero
        # contribution for padded rows AND padded batch columns.
        lT = jnp.pad(lT, ((0, pad_k), (0, pad_b)), constant_values=-1.0)

    kernel = functools.partial(_ranking_loss_kernel,
                               neg_penalty=float(neg_penalty),
                               k_classes=int(K))

    def in_map(c, t):
        return (0, c * nt_core + t)

    core_sem = pltpu.CORE_PARALLEL if nc > 1 else pltpu.ARBITRARY

    partials = pl.pallas_call(
        kernel,
        out_shape=jax.ShapeDtypeStruct((nc, 1, TB), jnp.float32),
        grid_spec=pltpu.PrefetchScalarGridSpec(
            num_scalar_prefetch=0,
            grid=(nc, nt_core),
            in_specs=[
                pl.BlockSpec((K_pad, TB), in_map),
                pl.BlockSpec((K_pad, TB), in_map),
            ],
            out_specs=pl.BlockSpec((1, 1, TB), lambda c, t: (c, 0, 0)),
            scratch_shapes=[pltpu.VMEM((K_pad, TB), jnp.float32)],
        ),
        compiler_params=pltpu.CompilerParams(
            dimension_semantics=(core_sem, pltpu.ARBITRARY),
        ),
        cost_estimate=pl.CostEstimate(
            flops=3 * K * K_pad * B_pad,
            transcendentals=0,
            bytes_accessed=2 * K_pad * B_pad * 4 + nc * TB * 4,
        ),
    )(rT, lT)

    # Cheap scalar tail in the wrapper: sum lane-dense partials, normalize by B.
    return (jnp.sum(partials) / jnp.float32(B)).reshape(1)


def _reference(ranks, labels, class_ids, neg_penalty=0.03):
    rn = np.asarray(ranks)
    ln = np.asarray(labels)
    ci = np.asarray(class_ids)
    rs = rn[:, ci]
    ls = ln[:, ci]
    total = 0.0
    for i in range(rs.shape[0]):
        correct = rs[i][ls[i] == 1]
        wrong = rs[i][ls[i] == 0]
        if correct.size and wrong.size:
            pen = neg_penalty + wrong[None, :] - correct[:, None]
            total += np.maximum(pen, 0.0).sum()
    return np.array([total / rs.shape[0]], dtype=np.float32)


if __name__ == "__main__":
    key = jax.random.PRNGKey(0)

    # --- small case matching the module defaults -------------------------
    B, C, K = 2, 16, 8  # batch, total classes, loaded classes
    k1, k2 = jax.random.split(key)
    ranks = jax.random.normal(k1, (B, C), dtype=jnp.float32)
    labels = (jax.random.uniform(k2, (B, C)) > 0.5).astype(jnp.float32)
    class_ids_loaded = jnp.arange(0, C, 2, dtype=jnp.int32)  # (K,)

    loss = ranking_loss(ranks, labels, class_ids_loaded, neg_penalty=0.03)
    loss = jax.block_until_ready(loss)
    ref = _reference(ranks, labels, class_ids_loaded, neg_penalty=0.03)
    assert loss.shape == (1,)
    assert np.allclose(np.asarray(loss), ref, rtol=1e-5, atol=1e-5), (loss, ref)

    # --- larger case: multi-tile accumulation + K not a multiple of 8 ----
    B2, C2, K2 = 300, 20, 12
    k3, k4 = jax.random.split(k1)
    ranks2 = jax.random.normal(k3, (B2, C2), dtype=jnp.float32)
    labels2 = (jax.random.uniform(k4, (B2, C2)) > 0.5).astype(jnp.float32)
    class_ids2 = jnp.arange(0, K2, 1, dtype=jnp.int32)

    loss2 = ranking_loss(ranks2, labels2, class_ids2, neg_penalty=0.03,
                         tile_b=128, num_cores=1)
    loss2 = jax.block_until_ready(loss2)
    ref2 = _reference(ranks2, labels2, class_ids2, neg_penalty=0.03)
    assert np.allclose(np.asarray(loss2), ref2, rtol=1e-4, atol=1e-4), (loss2, ref2)

    print("KERNEL_OK")
</pallas_src>

<mosaic_0001>
module attributes {stable_mosaic.version = 11 : i64} {
  func.func @_ranking_loss_kernel(%arg0: i32, %arg1: i32, %arg2: memref<8x128xf32, #tpu.memory_space<vmem>>, %arg3: memref<8x128xf32, #tpu.memory_space<vmem>>, %arg4: memref<1x1x128xf32, #tpu.memory_space<vmem>>, %arg5: memref<8x128xf32, #tpu.memory_space<vmem>>) attributes {dimension_semantics = [#tpu.dimension_semantics<arbitrary>, #tpu.dimension_semantics<arbitrary>], iteration_bounds = array<i64: 1, 1>, scalar_prefetch = 0 : i64, scratch_operands = 1 : i64, tpu.core_type = #tpu.core_type<tc>, window_params = [{transform_indices = @transform_0, window_bounds = array<i64: 8, 128>}, {transform_indices = @transform_1, window_bounds = array<i64: 8, 128>}, {transform_indices = @transform_2, window_bounds = array<i64: 1, 1, 128>}]} {
    %c0_i32 = arith.constant 0 : i32
    %0 = arith.cmpi eq, %arg1, %c0_i32 : i32
    %1 = arith.extui %0 : i1 to i32
    %c0_i32_0 = arith.constant 0 : i32
    %2 = arith.cmpi ne, %1, %c0_i32_0 : i32
    scf.if %2 {
      %cst_23 = arith.constant 0.000000e+00 : f32
      %70 = vector.broadcast %cst_23 : f32 to vector<8x128xf32>
      %c0_24 = arith.constant 0 : index
      %c0_25 = arith.constant 0 : index
      %71 = vector.load %arg5[%c0_24, %c0_25] : memref<8x128xf32, #tpu.memory_space<vmem>>, vector<8x128xf32>
      tpu.vector_store %arg5[%c0_24, %c0_25], %70 {strides = array<i32>} : memref<8x128xf32, #tpu.memory_space<vmem>>, vector<8x128xf32>,
    } else {
    }
    %c0 = arith.constant 0 : index
    %c0_1 = arith.constant 0 : index
    %3 = vector.load %arg2[%c0, %c0_1] : memref<8x128xf32, #tpu.memory_space<vmem>>, vector<8x128xf32>
    %c0_2 = arith.constant 0 : index
    %c0_3 = arith.constant 0 : index
    %4 = vector.load %arg3[%c0_2, %c0_3] : memref<8x128xf32, #tpu.memory_space<vmem>>, vector<8x128xf32>
    %cst = arith.constant 0.000000e+00 : f32
    %5 = vector.broadcast %cst : f32 to vector<8x128xf32>
    %6 = arith.cmpf oeq, %4, %5 : vector<8x128xf32>
    %cst_4 = arith.constant 3.000000e-02 : f32
    %7 = vector.broadcast %cst_4 : f32 to vector<8x128xf32>
    %8 = arith.addf %3, %7 : vector<8x128xf32>
    %cst_5 = arith.constant -1.000000e+30 : f32
    %9 = vector.broadcast %cst_5 : f32 to vector<8x128xf32>
    %10 = arith.select %6, %8, %9 : vector<8x128xi1>, vector<8x128xf32>
    %cst_6 = arith.constant 1.000000e+00 : f32
    %11 = vector.broadcast %cst_6 : f32 to vector<8x128xf32>
    %12 = arith.cmpf oeq, %4, %11 : vector<8x128xf32>
    %cst_7 = arith.constant 1.000000e+30 : f32
    %13 = vector.broadcast %cst_7 : f32 to vector<8x128xf32>
    %14 = arith.select %12, %3, %13 : vector<8x128xi1>, vector<8x128xf32>
    %cst_8 = arith.constant 0.000000e+00 : f32
    %15 = vector.broadcast %cst_8 : f32 to vector<8x128xf32>
    %16 = vector.extract_strided_slice %14 {offsets = [0, 0], sizes = [1, 128], strides = [1, 1]} : vector<8x128xf32> to vector<1x128xf32>
    %17 = vector.broadcast %16 : vector<1x128xf32> to vector<8x128xf32>
    %18 = arith.subf %10, %17 : vector<8x128xf32>
    %cst_9 = arith.constant 0.000000e+00 : f32
    %19 = vector.broadcast %cst_9 : f32 to vector<8x128xf32>
    %20 = arith.maximumf %18, %19 : vector<8x128xf32>
    %21 = arith.addf %15, %20 : vector<8x128xf32>
    %22 = vector.extract_strided_slice %14 {offsets = [1, 0], sizes = [1, 128], strides = [1, 1]} : vector<8x128xf32> to vector<1x128xf32>
    %23 = vector.broadcast %22 : vector<1x128xf32> to vector<8x128xf32>
    %24 = arith.subf %10, %23 : vector<8x128xf32>
    %cst_10 = arith.constant 0.000000e+00 : f32
    %25 = vector.broadcast %cst_10 : f32 to vector<8x128xf32>
    %26 = arith.maximumf %24, %25 : vector<8x128xf32>
    %27 = arith.addf %21, %26 : vector<8x128xf32>
    %28 = vector.extract_strided_slice %14 {offsets = [2, 0], sizes = [1, 128], strides = [1, 1]} : vector<8x128xf32> to vector<1x128xf32>
    %29 = vector.broadcast %28 : vector<1x128xf32> to vector<8x128xf32>
    %30 = arith.subf %10, %29 : vector<8x128xf32>
    %cst_11 = arith.constant 0.000000e+00 : f32
    %31 = vector.broadcast %cst_11 : f32 to vector<8x128xf32>
    %32 = arith.maximumf %30, %31 : vector<8x128xf32>
    %33 = arith.addf %27, %32 : vector<8x128xf32>
    %34 = vector.extract_strided_slice %14 {offsets = [3, 0], sizes = [1, 128], strides = [1, 1]} : vector<8x128xf32> to vector<1x128xf32>
    %35 = vector.broadcast %34 : vector<1x128xf32> to vector<8x128xf32>
    %36 = arith.subf %10, %35 : vector<8x128xf32>
    %cst_12 = arith.constant 0.000000e+00 : f32
    %37 = vector.broadcast %cst_12 : f32 to vector<8x128xf32>
    %38 = arith.maximumf %36, %37 : vector<8x128xf32>
    %39 = arith.addf %33, %38 : vector<8x128xf32>
    %40 = vector.extract_strided_slice %14 {offsets = [4, 0], sizes = [1, 128], strides = [1, 1]} : vector<8x128xf32> to vector<1x128xf32>
    %41 = vector.broadcast %40 : vector<1x128xf32> to vector<8x128xf32>
    %42 = arith.subf %10, %41 : vector<8x128xf32>
    %cst_13 = arith.constant 0.000000e+00 : f32
    %43 = vector.broadcast %cst_13 : f32 to vector<8x128xf32>
    %44 = arith.maximumf %42, %43 : vector<8x128xf32>
    %45 = arith.addf %39, %44 : vector<8x128xf32>
    %46 = vector.extract_strided_slice %14 {offsets = [5, 0], sizes = [1, 128], strides = [1, 1]} : vector<8x128xf32> to vector<1x128xf32>
    %47 = vector.broadcast %46 : vector<1x128xf32> to vector<8x128xf32>
    %48 = arith.subf %10, %47 : vector<8x128xf32>
    %cst_14 = arith.constant 0.000000e+00 : f32
    %49 = vector.broadcast %cst_14 : f32 to vector<8x128xf32>
    %50 = arith.maximumf %48, %49 : vector<8x128xf32>
    %51 = arith.addf %45, %50 : vector<8x128xf32>
    %52 = vector.extract_strided_slice %14 {offsets = [6, 0], sizes = [1, 128], strides = [1, 1]} : vector<8x128xf32> to vector<1x128xf32>
    %53 = vector.broadcast %52 : vector<1x128xf32> to vector<8x128xf32>
    %54 = arith.subf %10, %53 : vector<8x128xf32>
    %cst_15 = arith.constant 0.000000e+00 : f32
    %55 = vector.broadcast %cst_15 : f32 to vector<8x128xf32>
    %56 = arith.maximumf %54, %55 : vector<8x128xf32>
    %57 = arith.addf %51, %56 : vector<8x128xf32>
    %58 = vector.extract_strided_slice %14 {offsets = [7, 0], sizes = [1, 128], strides = [1, 1]} : vector<8x128xf32> to vector<1x128xf32>
    %59 = vector.broadcast %58 : vector<1x128xf32> to vector<8x128xf32>
    %60 = arith.subf %10, %59 : vector<8x128xf32>
    %cst_16 = arith.constant 0.000000e+00 : f32
    %61 = vector.broadcast %cst_16 : f32 to vector<8x128xf32>
    %62 = arith.maximumf %60, %61 : vector<8x128xf32>
    %63 = arith.addf %57, %62 : vector<8x128xf32>
    %c0_17 = arith.constant 0 : index
    %c0_18 = arith.constant 0 : index
    %64 = vector.load %arg5[%c0_17, %c0_18] : memref<8x128xf32, #tpu.memory_space<vmem>>, vector<8x128xf32>
    %65 = arith.addf %64, %63 : vector<8x128xf32>
    %c0_19 = arith.constant 0 : index
    %c0_20 = arith.constant 0 : index
    %66 = vector.load %arg5[%c0_19, %c0_20] : memref<8x128xf32, #tpu.memory_space<vmem>>, vector<8x128xf32>
    tpu.vector_store %arg5[%c0_19, %c0_20], %65 {strides = array<i32>} : memref<8x128xf32, #tpu.memory_space<vmem>>, vector<8x128xf32>,
    %c0_i32_21 = arith.constant 0 : i32
    %67 = arith.cmpi eq, %arg1, %c0_i32_21 : i32
    %68 = arith.extui %67 : i1 to i32
    %c0_i32_22 = arith.constant 0 : i32
    %69 = arith.cmpi ne, %68, %c0_i32_22 : i32
    scf.if %69 {
      %c0_23 = arith.constant 0 : index
      %c0_24 = arith.constant 0 : index
      %70 = vector.load %arg5[%c0_23, %c0_24] : memref<8x128xf32, #tpu.memory_space<vmem>>, vector<8x128xf32>
      %cst_25 = arith.constant dense<0.000000e+00> : vector<128xf32>
      %71 = vector.multi_reduction <add>, %70, %cst_25 [0] : vector<8x128xf32> to vector<128xf32>
      %72 = vector.shape_cast %71 : vector<128xf32> to vector<1x128xf32>
      %73 = vector.shape_cast %72 : vector<1x128xf32> to vector<1x1x128xf32>
      %c0_26 = arith.constant 0 : index
      %c0_27 = arith.constant 0 : index
      %c0_28 = arith.constant 0 : index
      %74 = vector.load %arg4[%c0_26, %c0_27, %c0_28] : memref<1x1x128xf32, #tpu.memory_space<vmem>>, vector<1x1x128xf32>
      tpu.vector_store %arg4[%c0_26, %c0_27, %c0_28], %73 {strides = array<i32>} : memref<1x1x128xf32, #tpu.memory_space<vmem>>, vector<1x1x128xf32>,
    } else {
    }
    return
  }
  func.func @transform_0(%arg0: i32, %arg1: i32) -> (i32, i32) {
    %c1_i32 = arith.constant 1 : i32
    %0 = arith.muli %arg0, %c1_i32 : i32
    %1 = arith.addi %0, %arg1 : i32
    %c0_i32 = arith.constant 0 : i32
    %c0_i32_0 = arith.constant 0 : i32
    return %c0_i32, %1 : i32, i32
  }
  func.func @transform_1(%arg0: i32, %arg1: i32) -> (i32, i32) {
    %c1_i32 = arith.constant 1 : i32
    %0 = arith.muli %arg0, %c1_i32 : i32
    %1 = arith.addi %0, %arg1 : i32
    %c0_i32 = arith.constant 0 : i32
    %c0_i32_0 = arith.constant 0 : i32
    return %c0_i32, %1 : i32, i32
  }
  func.func @transform_2(%arg0: i32, %arg1: i32) -> (i32, i32, i32) {
    %c0_i32 = arith.constant 0 : i32
    %c0_i32_0 = arith.constant 0 : i32
    %c0_i32_1 = arith.constant 0 : i32
    return %arg0, %c0_i32, %c0_i32_0 : i32, i32, i32
  }
}

</mosaic_0001>

<llo_original>
// kernel: tpu_custom_call.1
$region0: #{tpu_custom_call.1}
  #allocation0 [shape = 'u32[]', space=smem, size = 0x4, offset = 0x4, fixed_abs, tag = 'smem constant byte address 0x4 - core index']
  #allocation1 [shape = 'u32[144,128]{1,0:T(1,128)}', space=vmem, size = 0x12000, scoped, tag = 'internal scratch']
  #allocation2 [shape = 'f32[8,128]{1,0:T(8,128)}', space=vmem, size = 0x1000, scoped, tag = 'scratch operand']
  %s0 = inlined_call_operand.hbm [shape: f32[8,128], index: 0, kind: input, shape index: {}]
  %s1 = inlined_call_operand.hbm [shape: f32[8,128], index: 1, kind: input, shape index: {}]
  %s2 = inlined_call_operand.hbm [shape: f32[1,1,128], index: 2, kind: output, shape index: {}]
  %s3 = sld [smem:[#allocation0]]
  $region34: #{tpu_custom_call.1} parent=0
    _
  %s5 = ssub.s32 1, %s3
  %s6 = scalar_select 0, %s5, %s3
  $region1: #{tpu_custom_call.1} parent=0
    #allocation3 [shape = 'u8[4096]{0}', space=vmem, size = 0x1000, scoped, tag = 'input window, operand 0, single buffered']
    #allocation4 [shape = 's32[1]{0}', space=sflag, size = 0x4, scoped, tag = 'scoped memory for tpu_custom_call.1']
    #allocation5 [shape = 's32[1]{0}', space=sflag, size = 0x4, scoped, tag = 'scoped memory for tpu_custom_call.1']
    #allocation6 [shape = 'u8[4096]{0}', space=vmem, size = 0x1000, scoped, tag = 'input window, operand 1, single buffered']
    #allocation7 [shape = 's32[1]{0}', space=sflag, size = 0x4, scoped, tag = 'scoped memory for tpu_custom_call.1']
    #allocation8 [shape = 'u8[512]{0}', space=vmem, size = 0x400, scoped, tag = 'output window, operand 0, single buffered']
    %7 = vsyncpa [#allocation4], 0
    %8 = vsyncpa [#allocation7], 0
    %9 = vsyncpa [#allocation5], 0
    // Predicated region
    $region2: #{tpu_custom_call.1} parent=1 // pred_check
      _
    $region3: #{tpu_custom_call.1} parent=1 // pred_check_branch
      %11 = sbr.rel (0) target = $region5
    $region4: #{tpu_custom_call.1} parent=1 // pred_region
      %s12 = sadd.s32 0, 0
      %s14 = ssub.s32 128, 128
      %15 = vsyncadd [#allocation4], %s14
      %s16 = smul.addr %s12, 128
      %s17 = scalar_lea.hbm %s0, %s16
      %s19 = sshll.u32 [#allocation3], 4
      %s20 = int_to_ptr.vmem [resolvable:$true] %s19
      %22 = dma.hbm_to_vmem [thread:$0]  %s17, 128, %s20, [#allocation4]
    $region5: #{tpu_custom_call.1} parent=1 // pred_fallthru
      _
    // Predicated region
    $region6: #{tpu_custom_call.1} parent=1 // pred_check
      _
    $region7: #{tpu_custom_call.1} parent=1 // pred_check_branch
      %24 = sbr.rel (0) target = $region9
    $region8: #{tpu_custom_call.1} parent=1 // pred_region
      %s25 = sadd.s32 0, 0
      %s27 = ssub.s32 128, 128
      %28 = vsyncadd [#allocation7], %s27
      %s29 = smul.addr %s25, 128
      %s30 = scalar_lea.hbm %s1, %s29
      %s32 = sshll.u32 [#allocation6], 4
      %s33 = int_to_ptr.vmem [resolvable:$true] %s32
      %35 = dma.hbm_to_vmem [thread:$0]  %s30, 128, %s33, [#allocation7]
    $region9: #{tpu_custom_call.1} parent=1 // pred_fallthru
      _
    // Predicated region
    $region10: #{tpu_custom_call.1} parent=1 // pred_check
      _
    $region11: #{tpu_custom_call.1} parent=1 // pred_check_branch
      %37 = sbr.rel (0) target = $region13
    $region12: #{tpu_custom_call.1} parent=1 // pred_region
      %38 = dma.done [#allocation4], 128
    $region13: #{tpu_custom_call.1} parent=1 // pred_fallthru
      _
    // Predicated region
    $region14: #{tpu_custom_call.1} parent=1 // pred_check
      _
    $region15: #{tpu_custom_call.1} parent=1 // pred_check_branch
      %40 = sbr.rel (0) target = $region17
    $region16: #{tpu_custom_call.1} parent=1 // pred_region
      %41 = dma.done [#allocation7], 128
    $region17: #{tpu_custom_call.1} parent=1 // pred_fallthru
      _
    %s42 = sadd.s32 0, 0
    %s43 = sadd.s32 0, 0
    %p44 = scmp.eq.s32.totalorder 0, 0
    // Predicated region
    $region18: #{tpu_custom_call.1} parent=1 // pred_check
      %p45 = pneg %p44
    $region19: #{tpu_custom_call.1} parent=1 // pred_check_branch
      %47 = sbr.rel (%p45) target = $region21
    $region20: #{tpu_custom_call.1} parent=1 // pred_region
      %48 = vst [vmem:[#allocation2] sm:$0xff] 0.0
    $region21: #{tpu_custom_call.1} parent=1 // pred_fallthru
      _
    %v49 = vld [vmem:[#allocation3] sm:$0xff]
    %v50 = vld [vmem:[#allocation6] sm:$0xff]
    %vm51 = vcmp.eq.f32.partialorder %v50, 0.0
    %v52 = vadd.f32 %v49, 0.03
    %v53 = vsel %vm51, %v52, -1e+30
    %vm54 = vcmp.eq.f32.partialorder %v50, 1.0
    %v55 = vsel %vm54, %v49, 1e+30
    %v56 = vlaneseq
    %v57 = vshrl.u32 %v56, 7
    %v58 = vsub.s32 0, %v57
    %v59 = vrot.slane %v55, %v58
    %v60 = vsub.f32 %v53, %v59
    %v61 = vmax.f32 %v60, 0.0
    %v62 = vadd.f32 %v61, 0.0
    %v63 = vlaneseq
    %v64 = vshrl.u32 %v63, 7
    %v65 = vsub.s32 1, %v64
    %v66 = vrot.slane %v55, %v65
    %v67 = vsub.f32 %v53, %v66
    %v68 = vmax.f32 %v67, 0.0
    %v69 = vadd.f32 %v62, %v68
    %v70 = vlaneseq
    %v71 = vshrl.u32 %v70, 7
    %v72 = vsub.s32 2, %v71
    %v73 = vrot.slane %v55, %v72
    %v74 = vsub.f32 %v53, %v73
    %v75 = vmax.f32 %v74, 0.0
    %v76 = vadd.f32 %v69, %v75
    %v77 = vlaneseq
    %v78 = vshrl.u32 %v77, 7
    %v79 = vsub.s32 3, %v78
    %v80 = vrot.slane %v55, %v79
    %v81 = vsub.f32 %v53, %v80
    %v82 = vmax.f32 %v81, 0.0
    %v83 = vadd.f32 %v76, %v82
    %v84 = vlaneseq
    %v85 = vshrl.u32 %v84, 7
    %v86 = vsub.s32 4, %v85
    %v87 = vrot.slane %v55, %v86
    %v88 = vsub.f32 %v53, %v87
    %v89 = vmax.f32 %v88, 0.0
    %v90 = vadd.f32 %v83, %v89
    %v91 = vlaneseq
    %v92 = vshrl.u32 %v91, 7
    %v93 = vsub.s32 5, %v92
    %v94 = vrot.slane %v55, %v93
    %v95 = vsub.f32 %v53, %v94
    %v96 = vmax.f32 %v95, 0.0
    %v97 = vadd.f32 %v90, %v96
    %v98 = vlaneseq
    %v99 = vshrl.u32 %v98, 7
    %v100 = vsub.s32 6, %v99
    %v101 = vrot.slane %v55, %v100
    %v102 = vsub.f32 %v53, %v101
    %v103 = vmax.f32 %v102, 0.0
    %v104 = vadd.f32 %v97, %v103
    %v105 = vlaneseq
    %v106 = vshrl.u32 %v105, 7
    %v107 = vsub.s32 7, %v106
    %v108 = vrot.slane %v55, %v107
    %v109 = vsub.f32 %v53, %v108
    %v110 = vmax.f32 %v109, 0.0
    %v111 = vadd.f32 %v104, %v110
    %v112 = vld [vmem:[#allocation2] sm:$0xff]
    %v113 = vadd.f32 %v112, %v111
    %114 = vst [vmem:[#allocation2] sm:$0xff] %v113
    // Predicated region
    $region22: #{tpu_custom_call.1} parent=1 // pred_check
      %p115 = pneg %p44
    $region23: #{tpu_custom_call.1} parent=1 // pred_check_branch
      %117 = sbr.rel (%p115) target = $region25
    $region24: #{tpu_custom_call.1} parent=1 // pred_region
      %v118 = vld [vmem:[#allocation2] sm:$0xff]
      %v119 = vrot.slane %v118, 4
      %v120 = vadd.f32 %v118, %v119
      %v121 = vrot.slane %v120, 2
      %v122 = vadd.f32 %v120, %v121
      %v123 = vrot.slane %v122, 1
      %v124 = vadd.f32 %v122, %v123
      %125 = vst [vmem:[#allocation8] sm:$0x1] %v124
    $region25: #{tpu_custom_call.1} parent=1 // pred_fallthru
      _
    // Predicated region
    $region26: #{tpu_custom_call.1} parent=1 // pred_check
      _
    $region27: #{tpu_custom_call.1} parent=1 // pred_check_branch
      %127 = sbr.rel (0) target = $region29
    $region28: #{tpu_custom_call.1} parent=1 // pred_region
      %s129 = ssub.s32 16, 16
      %130 = vsyncadd [#allocation5], %s129
      %s132 = sshll.u32 [#allocation8], 4
      %s133 = int_to_ptr.vmem [resolvable:$true] %s132
      %135 = dma.vmem_to_hbm [thread:$0]  %s133, 16, %s2, [#allocation5]
    $region29: #{tpu_custom_call.1} parent=1 // pred_fallthru
      _
    // Predicated region
    $region30: #{tpu_custom_call.1} parent=1 // pred_check
      _
    $region31: #{tpu_custom_call.1} parent=1 // pred_check_branch
      %137 = sbr.rel (0) target = $region33
    $region32: #{tpu_custom_call.1} parent=1 // pred_region
      %138 = dma.done [#allocation5], 16
    $region33: #{tpu_custom_call.1} parent=1 // pred_fallthru
      _
    %139 = vsyncpa [#allocation4], 1
    %140 = vsyncpa [#allocation7], 1
    %141 = vsyncpa [#allocation5], 1

</llo_original>
